<compile_context>
chip_gen: v7x
topology: tpu7x:2x2x1
jax: 0.10.0
libtpu: 0.0.40
codegen_flags: <defaults>
</compile_context>

<pallas_src>
import functools

import jax
import jax.numpy as jnp
from jax.experimental import pallas as pl
from jax.experimental.pallas import tpu as pltpu


def _round_up(a, b):
    return (a + b - 1) // b * b


# ---------------------------------------------------------------------------
# Kernel: one batch tile through all six (BN-folded, head-fused) linear layers.
# ---------------------------------------------------------------------------
def _make_kernel(mm_dtype, out_width):
    def kernel(x_ref,
               w1, b1, w2, b2, w3, b3, w4, b4, w5, b5, w6, b6,
               o_ref):
        # Single input cast; activations carried in mm_dtype (bf16) afterwards.
        h = x_ref[...].astype(mm_dtype)

        def layer(h, w_ref, b_ref, relu):
            # MXU matmul with f32 accumulation; bias add / ReLU in f32.
            y = jnp.dot(h, w_ref[...],
                        preferred_element_type=jnp.float32) + b_ref[...]
            if relu:
                # Fuse the ReLU with the cast back to the matmul dtype so only
                # the narrow activation stays live (halves vreg pressure).
                return jnp.maximum(y, 0.0).astype(mm_dtype)
            return y  # keep final logits in f32

        h = layer(h, w1, b1, True)    # Linear+BN+ReLU (BN folded)
        h = layer(h, w2, b2, True)
        h = layer(h, w3, b3, True)
        h = layer(h, w4, b4, True)
        h = layer(h, w5, b5, True)
        h = layer(h, w6, b6, False)   # latent Linear(H, x_out) fused with head W

        # Store only the true logit width: lane-full matmul, narrow writeback.
        o_ref[...] = h[:, :out_width].astype(o_ref.dtype)

    return kernel


# ---------------------------------------------------------------------------
# Wrapper: fold BN, fuse head, pad lanes, tile the batch.
# ---------------------------------------------------------------------------
def _prepare_operands(params, mm_dtype, lane=128):
    """Returns [w1, b1, ..., w6, b6] with BN folded, head fused, lanes padded."""
    ws, bs = [], []
    for i in range(1, 6):
        w = params[f"w{i}"].astype(jnp.float32)      # (din, dout)
        b = params[f"b{i}"].astype(jnp.float32)      # (1, dout)
        s = params[f"s{i}"].astype(jnp.float32)      # eval-mode BN scale
        t = params[f"t{i}"].astype(jnp.float32)      # eval-mode BN shift
        ws.append(w * s)                             # fold BN into weights
        bs.append(b * s + t)                         # fold BN into bias
    # layer 6 has no BN / ReLU -> exact composition with the 2-wide head.
    ws.append(params["w6"].astype(jnp.float32) @ params["wf"].astype(jnp.float32))
    bs.append(params["b6"].astype(jnp.float32) @ params["wf"].astype(jnp.float32)
              + params["bf"].astype(jnp.float32))

    operands = []
    prev_pad = ws[0].shape[0]            # x_in stays unpadded (matches x block)
    for w, b in zip(ws, bs):
        din, dout = w.shape
        dout_p = _round_up(dout, lane)
        w_p = jnp.zeros((prev_pad, dout_p), jnp.float32).at[:din, :dout].set(w)
        b_p = jnp.zeros((1, dout_p), jnp.float32).at[:, :dout].set(b)
        operands += [w_p.astype(mm_dtype), b_p]      # weights bf16/f32, bias f32
        prev_pad = dout_p
    return operands


def neuralnet_forward(x, params, *, tm=512, mm_dtype=jnp.bfloat16):
    """x: (N, x_in) float32.  Returns (N, 2) float32 logits."""
    N, x_in = x.shape

    # Batch tile: sized from N, 8-aligned, capped at tm.
    tm_eff = min(tm, _round_up(N, 8))
    # Split one whole-batch tile across two TensorCores only when each half is
    # still >= 256 rows (v7x benefit); never split small tiles (pure overhead
    # on single-TC v5e/v6e and too small to feed the MXU anyway).
    if N <= tm_eff and tm_eff >= 512:
        tm_eff //= 2
    grid = pl.cdiv(N, tm_eff)

    operands = _prepare_operands(params, mm_dtype)

    def full_spec(arr):
        # Constant block index -> Pallas keeps the (small) parameter resident
        # in VMEM; no per-step re-DMA.
        return pl.BlockSpec(arr.shape, lambda i: (0, 0))

    in_specs = [pl.BlockSpec((tm_eff, x_in), lambda i: (i, 0))] + \
               [full_spec(a) for a in operands]

    kernel = _make_kernel(mm_dtype, out_width=2)

    out = pl.pallas_call(
        kernel,
        out_shape=jax.ShapeDtypeStruct((N, 2), jnp.float32),
        grid_spec=pltpu.PrefetchScalarGridSpec(
            num_scalar_prefetch=0,
            grid=(grid,),
            in_specs=in_specs,
            # Narrow, true-width output block: last dim equals the full array
            # dim (2), so the (tm_eff, 2) block is legal; the masked store is
            # noise next to six matmuls and saves 64x HBM writeback volume.
            out_specs=pl.BlockSpec((tm_eff, 2), lambda i: (i, 0)),
        ),
        compiler_params=pltpu.CompilerParams(
            dimension_semantics=("parallel",)),
    )(x, *operands)

    return out


# ---------------------------------------------------------------------------
# Parameter construction + pure-JAX reference (for correctness checking).
# ---------------------------------------------------------------------------
def init_params(key, x_in, H, x_out, dtype=jnp.float32):
    """Deterministic synthetic parameters matching the PyTorch module shapes."""
    dims = [(x_in, H), (H, 2 * H), (2 * H, 4 * H),
            (4 * H, 2 * H), (2 * H, H), (H, x_out)]
    params = {}
    keys = jax.random.split(key, 6 * len(dims) + 2)
    ki = 0
    eps = 1e-5
    for li, (din, dout) in enumerate(dims, start=1):
        bound = 1.0 / jnp.sqrt(din)
        # stored already transposed: (in_features, out_features)
        params[f"w{li}"] = jax.random.uniform(
            keys[ki], (din, dout), dtype, minval=-bound, maxval=bound); ki += 1
        params[f"b{li}"] = jax.random.uniform(
            keys[ki], (1, dout), dtype, minval=-bound, maxval=bound); ki += 1
        if li <= 5:
            # non-trivial eval-mode BatchNorm1d(dout) statistics
            gamma = 1.0 + 0.1 * jax.random.normal(keys[ki], (1, dout), dtype); ki += 1
            beta = 0.1 * jax.random.normal(keys[ki], (1, dout), dtype); ki += 1
            rmean = 0.1 * jax.random.normal(keys[ki], (1, dout), dtype); ki += 1
            rvar = jnp.abs(1.0 + 0.1 * jax.random.normal(keys[ki], (1, dout), dtype)); ki += 1
            scale = gamma / jnp.sqrt(rvar + eps)
            params[f"s{li}"] = scale
            params[f"t{li}"] = beta - rmean * scale
    # head: Linear(x_out, 2)
    bound = 1.0 / jnp.sqrt(x_out)
    params["wf"] = jax.random.uniform(
        keys[ki], (x_out, 2), dtype, minval=-bound, maxval=bound); ki += 1
    params["bf"] = jax.random.uniform(
        keys[ki], (1, 2), dtype, minval=-bound, maxval=bound); ki += 1
    return params


def reference_forward(x, params):
    """Pure-JAX reference (unfolded, f32) for correctness checking."""
    h = x.astype(jnp.float32)
    for i in range(1, 6):
        h = h @ params[f"w{i}"] + params[f"b{i}"]
        h = h * params[f"s{i}"] + params[f"t{i}"]   # eval-mode BatchNorm1d
        h = jnp.maximum(h, 0.0)
    h = h @ params["w6"] + params["b6"]
    return h @ params["wf"] + params["bf"]


if __name__ == "__main__":
    x_in, H, x_out = 32, 32, 16
    N = 64

    key = jax.random.PRNGKey(0)
    kx, kp = jax.random.split(key)
    x = jax.random.normal(kx, (N, x_in), jnp.float32)
    params = init_params(kp, x_in, H, x_out)

    ref = reference_forward(x, params)

    # 1) f32 matmul path: tight tolerance (checks the fold/fuse/pad algebra).
    out_f32 = jax.block_until_ready(
        neuralnet_forward(x, params, mm_dtype=jnp.float32))
    assert out_f32.shape == (N, 2)
    assert jnp.allclose(out_f32, ref, atol=1e-4, rtol=1e-4), "f32 path mismatch"

    # 2) default bf16-MXU path: looser tolerance (expected bf16 rounding).
    out = jax.block_until_ready(neuralnet_forward(x, params))
    assert out.shape == (N, 2)
    assert jnp.allclose(out, ref, atol=3e-2, rtol=3e-2), "bf16 path mismatch"

    print("KERNEL_OK")
</pallas_src>

<mosaic_0001>
module attributes {stable_mosaic.version = 11 : i64} {
  func.func @kernel(%arg0: i32, %arg1: memref<64x32xf32, #tpu.memory_space<vmem>>, %arg2: memref<32x128xf32, #tpu.memory_space<vmem>>, %arg3: memref<1x128xf32, #tpu.memory_space<vmem>>, %arg4: memref<128x128xf32, #tpu.memory_space<vmem>>, %arg5: memref<1x128xf32, #tpu.memory_space<vmem>>, %arg6: memref<128x128xf32, #tpu.memory_space<vmem>>, %arg7: memref<1x128xf32, #tpu.memory_space<vmem>>, %arg8: memref<128x128xf32, #tpu.memory_space<vmem>>, %arg9: memref<1x128xf32, #tpu.memory_space<vmem>>, %arg10: memref<128x128xf32, #tpu.memory_space<vmem>>, %arg11: memref<1x128xf32, #tpu.memory_space<vmem>>, %arg12: memref<128x128xf32, #tpu.memory_space<vmem>>, %arg13: memref<1x128xf32, #tpu.memory_space<vmem>>, %arg14: memref<64x2xf32, #tpu.memory_space<vmem>>) attributes {dimension_semantics = [#tpu.dimension_semantics<parallel>], iteration_bounds = array<i64: 1>, scalar_prefetch = 0 : i64, scratch_operands = 0 : i64, tpu.core_type = #tpu.core_type<tc>, window_params = [{transform_indices = @transform_0, window_bounds = array<i64: 64, 32>}, {pipeline_mode = #tpu.pipeline_mode<synchronous>, transform_indices = @transform_1, window_bounds = array<i64: 32, 128>}, {pipeline_mode = #tpu.pipeline_mode<synchronous>, transform_indices = @transform_2, window_bounds = array<i64: 1, 128>}, {pipeline_mode = #tpu.pipeline_mode<synchronous>, transform_indices = @transform_3, window_bounds = array<i64: 128, 128>}, {pipeline_mode = #tpu.pipeline_mode<synchronous>, transform_indices = @transform_4, window_bounds = array<i64: 1, 128>}, {pipeline_mode = #tpu.pipeline_mode<synchronous>, transform_indices = @transform_5, window_bounds = array<i64: 128, 128>}, {pipeline_mode = #tpu.pipeline_mode<synchronous>, transform_indices = @transform_6, window_bounds = array<i64: 1, 128>}, {pipeline_mode = #tpu.pipeline_mode<synchronous>, transform_indices = @transform_7, window_bounds = array<i64: 128, 128>}, {pipeline_mode = #tpu.pipeline_mode<synchronous>, transform_indices = @transform_8, window_bounds = array<i64: 1, 128>}, {pipeline_mode = #tpu.pipeline_mode<synchronous>, transform_indices = @transform_9, window_bounds = array<i64: 128, 128>}, {pipeline_mode = #tpu.pipeline_mode<synchronous>, transform_indices = @transform_10, window_bounds = array<i64: 1, 128>}, {pipeline_mode = #tpu.pipeline_mode<synchronous>, transform_indices = @transform_11, window_bounds = array<i64: 128, 128>}, {pipeline_mode = #tpu.pipeline_mode<synchronous>, transform_indices = @transform_12, window_bounds = array<i64: 1, 128>}, {transform_indices = @transform_13, window_bounds = array<i64: 64, 2>}]} {
    %c0 = arith.constant 0 : index
    %c0_0 = arith.constant 0 : index
    %0 = vector.load %arg1[%c0, %c0_0] : memref<64x32xf32, #tpu.memory_space<vmem>>, vector<64x32xf32>
    %c0_1 = arith.constant 0 : index
    %c0_2 = arith.constant 0 : index
    %1 = vector.load %arg2[%c0_1, %c0_2] : memref<32x128xf32, #tpu.memory_space<vmem>>, vector<32x128xf32>
    %cst = arith.constant dense<0.000000e+00> : vector<64x128xf32>
    %2 = tpu.matmul %0, %1, %cst {dimension_numbers = #tpu.dot_dimension_numbers<[1], [0], [0], [1], [0, 0, 1, 1], [], []>} : vector<64x32xf32>, vector<32x128xf32>, vector<64x128xf32> -> vector<64x128xf32>
    %c0_3 = arith.constant 0 : index
    %c0_4 = arith.constant 0 : index
    %3 = vector.load %arg3[%c0_3, %c0_4] : memref<1x128xf32, #tpu.memory_space<vmem>>, vector<1x128xf32>
    %4 = vector.broadcast %3 : vector<1x128xf32> to vector<64x128xf32>
    %5 = arith.addf %2, %4 : vector<64x128xf32>
    %cst_5 = arith.constant 0.000000e+00 : f32
    %6 = vector.broadcast %cst_5 : f32 to vector<64x128xf32>
    %7 = arith.maximumf %5, %6 : vector<64x128xf32>
    %c0_6 = arith.constant 0 : index
    %c0_7 = arith.constant 0 : index
    %8 = vector.load %arg4[%c0_6, %c0_7] : memref<128x128xf32, #tpu.memory_space<vmem>>, vector<128x128xf32>
    %cst_8 = arith.constant dense<0.000000e+00> : vector<64x128xf32>
    %9 = tpu.matmul %7, %8, %cst_8 {dimension_numbers = #tpu.dot_dimension_numbers<[1], [0], [0], [1], [0, 0, 1, 1], [], []>} : vector<64x128xf32>, vector<128x128xf32>, vector<64x128xf32> -> vector<64x128xf32>
    %c0_9 = arith.constant 0 : index
    %c0_10 = arith.constant 0 : index
    %10 = vector.load %arg5[%c0_9, %c0_10] : memref<1x128xf32, #tpu.memory_space<vmem>>, vector<1x128xf32>
    %11 = vector.broadcast %10 : vector<1x128xf32> to vector<64x128xf32>
    %12 = arith.addf %9, %11 : vector<64x128xf32>
    %cst_11 = arith.constant 0.000000e+00 : f32
    %13 = vector.broadcast %cst_11 : f32 to vector<64x128xf32>
    %14 = arith.maximumf %12, %13 : vector<64x128xf32>
    %c0_12 = arith.constant 0 : index
    %c0_13 = arith.constant 0 : index
    %15 = vector.load %arg6[%c0_12, %c0_13] : memref<128x128xf32, #tpu.memory_space<vmem>>, vector<128x128xf32>
    %cst_14 = arith.constant dense<0.000000e+00> : vector<64x128xf32>
    %16 = tpu.matmul %14, %15, %cst_14 {dimension_numbers = #tpu.dot_dimension_numbers<[1], [0], [0], [1], [0, 0, 1, 1], [], []>} : vector<64x128xf32>, vector<128x128xf32>, vector<64x128xf32> -> vector<64x128xf32>
    %c0_15 = arith.constant 0 : index
    %c0_16 = arith.constant 0 : index
    %17 = vector.load %arg7[%c0_15, %c0_16] : memref<1x128xf32, #tpu.memory_space<vmem>>, vector<1x128xf32>
    %18 = vector.broadcast %17 : vector<1x128xf32> to vector<64x128xf32>
    %19 = arith.addf %16, %18 : vector<64x128xf32>
    %cst_17 = arith.constant 0.000000e+00 : f32
    %20 = vector.broadcast %cst_17 : f32 to vector<64x128xf32>
    %21 = arith.maximumf %19, %20 : vector<64x128xf32>
    %c0_18 = arith.constant 0 : index
    %c0_19 = arith.constant 0 : index
    %22 = vector.load %arg8[%c0_18, %c0_19] : memref<128x128xf32, #tpu.memory_space<vmem>>, vector<128x128xf32>
    %cst_20 = arith.constant dense<0.000000e+00> : vector<64x128xf32>
    %23 = tpu.matmul %21, %22, %cst_20 {dimension_numbers = #tpu.dot_dimension_numbers<[1], [0], [0], [1], [0, 0, 1, 1], [], []>} : vector<64x128xf32>, vector<128x128xf32>, vector<64x128xf32> -> vector<64x128xf32>
    %c0_21 = arith.constant 0 : index
    %c0_22 = arith.constant 0 : index
    %24 = vector.load %arg9[%c0_21, %c0_22] : memref<1x128xf32, #tpu.memory_space<vmem>>, vector<1x128xf32>
    %25 = vector.broadcast %24 : vector<1x128xf32> to vector<64x128xf32>
    %26 = arith.addf %23, %25 : vector<64x128xf32>
    %cst_23 = arith.constant 0.000000e+00 : f32
    %27 = vector.broadcast %cst_23 : f32 to vector<64x128xf32>
    %28 = arith.maximumf %26, %27 : vector<64x128xf32>
    %c0_24 = arith.constant 0 : index
    %c0_25 = arith.constant 0 : index
    %29 = vector.load %arg10[%c0_24, %c0_25] : memref<128x128xf32, #tpu.memory_space<vmem>>, vector<128x128xf32>
    %cst_26 = arith.constant dense<0.000000e+00> : vector<64x128xf32>
    %30 = tpu.matmul %28, %29, %cst_26 {dimension_numbers = #tpu.dot_dimension_numbers<[1], [0], [0], [1], [0, 0, 1, 1], [], []>} : vector<64x128xf32>, vector<128x128xf32>, vector<64x128xf32> -> vector<64x128xf32>
    %c0_27 = arith.constant 0 : index
    %c0_28 = arith.constant 0 : index
    %31 = vector.load %arg11[%c0_27, %c0_28] : memref<1x128xf32, #tpu.memory_space<vmem>>, vector<1x128xf32>
    %32 = vector.broadcast %31 : vector<1x128xf32> to vector<64x128xf32>
    %33 = arith.addf %30, %32 : vector<64x128xf32>
    %cst_29 = arith.constant 0.000000e+00 : f32
    %34 = vector.broadcast %cst_29 : f32 to vector<64x128xf32>
    %35 = arith.maximumf %33, %34 : vector<64x128xf32>
    %c0_30 = arith.constant 0 : index
    %c0_31 = arith.constant 0 : index
    %36 = vector.load %arg12[%c0_30, %c0_31] : memref<128x128xf32, #tpu.memory_space<vmem>>, vector<128x128xf32>
    %cst_32 = arith.constant dense<0.000000e+00> : vector<64x128xf32>
    %37 = tpu.matmul %35, %36, %cst_32 {dimension_numbers = #tpu.dot_dimension_numbers<[1], [0], [0], [1], [0, 0, 1, 1], [], []>} : vector<64x128xf32>, vector<128x128xf32>, vector<64x128xf32> -> vector<64x128xf32>
    %c0_33 = arith.constant 0 : index
    %c0_34 = arith.constant 0 : index
    %38 = vector.load %arg13[%c0_33, %c0_34] : memref<1x128xf32, #tpu.memory_space<vmem>>, vector<1x128xf32>
    %39 = vector.broadcast %38 : vector<1x128xf32> to vector<64x128xf32>
    %40 = arith.addf %37, %39 : vector<64x128xf32>
    %41 = vector.extract_strided_slice %40 {offsets = [0, 0], sizes = [64, 2], strides = [1, 1]} : vector<64x128xf32> to vector<64x2xf32>
    %c0_35 = arith.constant 0 : index
    %c0_36 = arith.constant 0 : index
    %42 = vector.load %arg14[%c0_35, %c0_36] : memref<64x2xf32, #tpu.memory_space<vmem>>, vector<64x2xf32>
    tpu.vector_store %arg14[%c0_35, %c0_36], %41 {strides = array<i32>} : memref<64x2xf32, #tpu.memory_space<vmem>>, vector<64x2xf32>,
    return
  }
  func.func @transform_0(%arg0: i32) -> (i32, i32) {
    %c0_i32 = arith.constant 0 : i32
    %c0_i32_0 = arith.constant 0 : i32
    return %arg0, %c0_i32 : i32, i32
  }
  func.func @transform_1(%arg0: i32) -> (i32, i32) {
    %c0_i32 = arith.constant 0 : i32
    %c0_i32_0 = arith.constant 0 : i32
    %c0_i32_1 = arith.constant 0 : i32
    return %c0_i32, %c0_i32_0 : i32, i32
  }
  func.func @transform_2(%arg0: i32) -> (i32, i32) {
    %c0_i32 = arith.constant 0 : i32
    %c0_i32_0 = arith.constant 0 : i32
    %c0_i32_1 = arith.constant 0 : i32
    return %c0_i32, %c0_i32_0 : i32, i32
  }
  func.func @transform_3(%arg0: i32) -> (i32, i32) {
    %c0_i32 = arith.constant 0 : i32
    %c0_i32_0 = arith.constant 0 : i32
    %c0_i32_1 = arith.constant 0 : i32
    return %c0_i32, %c0_i32_0 : i32, i32
  }
  func.func @transform_4(%arg0: i32) -> (i32, i32) {
    %c0_i32 = arith.constant 0 : i32
    %c0_i32_0 = arith.constant 0 : i32
    %c0_i32_1 = arith.constant 0 : i32
    return %c0_i32, %c0_i32_0 : i32, i32
  }
  func.func @transform_5(%arg0: i32) -> (i32, i32) {
    %c0_i32 = arith.constant 0 : i32
    %c0_i32_0 = arith.constant 0 : i32
    %c0_i32_1 = arith.constant 0 : i32
    return %c0_i32, %c0_i32_0 : i32, i32
  }
  func.func @transform_6(%arg0: i32) -> (i32, i32) {
    %c0_i32 = arith.constant 0 : i32
    %c0_i32_0 = arith.constant 0 : i32
    %c0_i32_1 = arith.constant 0 : i32
    return %c0_i32, %c0_i32_0 : i32, i32
  }
  func.func @transform_7(%arg0: i32) -> (i32, i32) {
    %c0_i32 = arith.constant 0 : i32
    %c0_i32_0 = arith.constant 0 : i32
    %c0_i32_1 = arith.constant 0 : i32
    return %c0_i32, %c0_i32_0 : i32, i32
  }
  func.func @transform_8(%arg0: i32) -> (i32, i32) {
    %c0_i32 = arith.constant 0 : i32
    %c0_i32_0 = arith.constant 0 : i32
    %c0_i32_1 = arith.constant 0 : i32
    return %c0_i32, %c0_i32_0 : i32, i32
  }
  func.func @transform_9(%arg0: i32) -> (i32, i32) {
    %c0_i32 = arith.constant 0 : i32
    %c0_i32_0 = arith.constant 0 : i32
    %c0_i32_1 = arith.constant 0 : i32
    return %c0_i32, %c0_i32_0 : i32, i32
  }
  func.func @transform_10(%arg0: i32) -> (i32, i32) {
    %c0_i32 = arith.constant 0 : i32
    %c0_i32_0 = arith.constant 0 : i32
    %c0_i32_1 = arith.constant 0 : i32
    return %c0_i32, %c0_i32_0 : i32, i32
  }
  func.func @transform_11(%arg0: i32) -> (i32, i32) {
    %c0_i32 = arith.constant 0 : i32
    %c0_i32_0 = arith.constant 0 : i32
    %c0_i32_1 = arith.constant 0 : i32
    return %c0_i32, %c0_i32_0 : i32, i32
  }
  func.func @transform_12(%arg0: i32) -> (i32, i32) {
    %c0_i32 = arith.constant 0 : i32
    %c0_i32_0 = arith.constant 0 : i32
    %c0_i32_1 = arith.constant 0 : i32
    return %c0_i32, %c0_i32_0 : i32, i32
  }
  func.func @transform_13(%arg0: i32) -> (i32, i32) {
    %c0_i32 = arith.constant 0 : i32
    %c0_i32_0 = arith.constant 0 : i32
    return %arg0, %c0_i32 : i32, i32
  }
}

</mosaic_0001>

<llo_original>
// kernel: tpu_custom_call.1
$region0: #{tpu_custom_call.1}
  #allocation0 [shape = 'u32[]', space=smem, size = 0x4, offset = 0x4, fixed_abs, tag = 'smem constant byte address 0x4 - core index']
  #allocation1 [shape = 'u32[144,128]{1,0:T(1,128)}', space=vmem, size = 0x12000, scoped, tag = 'internal scratch']
  %s0 = inlined_call_operand.vmem [shape: f32[64,32], index: 0, kind: input, shape index: {}]
  %s1 = inlined_call_operand.hbm [shape: f32[32,128], index: 1, kind: input, shape index: {}]
  %s2 = inlined_call_operand.vmem [shape: f32[1,128], index: 2, kind: input, shape index: {}]
  %s3 = inlined_call_operand.hbm [shape: f32[128,128], index: 3, kind: input, shape index: {}]
  %s4 = inlined_call_operand.vmem [shape: f32[1,128], index: 4, kind: input, shape index: {}]
  %s5 = inlined_call_operand.hbm [shape: f32[128,128], index: 5, kind: input, shape index: {}]
  %s6 = inlined_call_operand.hbm [shape: f32[1,128], index: 6, kind: input, shape index: {}]
  %s7 = inlined_call_operand.hbm [shape: f32[128,128], index: 7, kind: input, shape index: {}]
  %s8 = inlined_call_operand.hbm [shape: f32[1,128], index: 8, kind: input, shape index: {}]
  %s9 = inlined_call_operand.vmem [shape: f32[128,128], index: 9, kind: input, shape index: {}]
  %s10 = inlined_call_operand.vmem [shape: f32[1,128], index: 10, kind: input, shape index: {}]
  %s11 = inlined_call_operand.hbm [shape: f32[128,128], index: 11, kind: input, shape index: {}]
  %s12 = inlined_call_operand.vmem [shape: f32[1,128], index: 12, kind: input, shape index: {}]
  %s13 = inlined_call_operand.vmem [shape: f32[64,2], index: 13, kind: output, shape index: {}]
  %s14 = sld [smem:[#allocation0]]
  $region90: #{tpu_custom_call.1} parent=0
    _
  %s16 = ssub.s32 1, %s14
  %s17 = scalar_select 0, %s16, %s14
  $region1: #{tpu_custom_call.1} parent=0
    #allocation2 [shape = 'u8[16384]{0}', space=vmem, size = 0x4000, scoped, tag = 'input window, operand 1, single buffered']
    #allocation3 [shape = 's32[1]{0}', space=sflag, size = 0x4, scoped, tag = 'scoped memory for tpu_custom_call.1']
    #allocation4 [shape = 'u8[65536]{0}', space=vmem, size = 0x10000, scoped, tag = 'input window, operand 3, single buffered']
    #allocation5 [shape = 's32[1]{0}', space=sflag, size = 0x4, scoped, tag = 'scoped memory for tpu_custom_call.1']
    #allocation6 [shape = 'u8[65536]{0}', space=vmem, size = 0x10000, scoped, tag = 'input window, operand 5, single buffered']
    #allocation7 [shape = 'u8[512]{0}', space=vmem, size = 0x400, scoped, tag = 'input window, operand 6, single buffered']
    #allocation8 [shape = 's32[1]{0}', space=sflag, size = 0x4, scoped, tag = 'scoped memory for tpu_custom_call.1']
    #allocation9 [shape = 'u8[65536]{0}', space=vmem, size = 0x10000, scoped, tag = 'input window, operand 7, single buffered']
    #allocation10 [shape = 'u8[512]{0}', space=vmem, size = 0x400, scoped, tag = 'input window, operand 8, single buffered']
    #allocation11 [shape = 's32[1]{0}', space=sflag, size = 0x4, scoped, tag = 'scoped memory for tpu_custom_call.1']
    #allocation12 [shape = 'u8[65536]{0}', space=vmem, size = 0x10000, scoped, tag = 'input window, operand 11, single buffered']
    %18 = vsyncpa [#allocation3], 0
    %19 = vsyncpa [#allocation5], 0
    %20 = vsyncpa [#allocation8], 0
    %21 = vsyncpa [#allocation11], 0
    // Predicated region
    $region2: #{tpu_custom_call.1} parent=1 // pred_check
      _
    $region3: #{tpu_custom_call.1} parent=1 // pred_check_branch
      %23 = sbr.rel (0) target = $region5
    $region4: #{tpu_custom_call.1} parent=1 // pred_region
      _
    $region5: #{tpu_custom_call.1} parent=1 // pred_fallthru
      _
    // Predicated region
    $region6: #{tpu_custom_call.1} parent=1 // pred_check
      _
    $region7: #{tpu_custom_call.1} parent=1 // pred_check_branch
      %25 = sbr.rel (0) target = $region9
    $region8: #{tpu_custom_call.1} parent=1 // pred_region
      %s27 = ssub.s32 512, 512
      %28 = vsyncadd [#allocation3], %s27
      %s29 = sshll.u32 [#allocation2], 4
      %s30 = int_to_ptr.vmem [resolvable:$true] %s29
      %35 = dma.hbm_to_vmem [thread:$0]  %s1, 512, %s30, [#allocation3], 128, 128, 8
    $region9: #{tpu_custom_call.1} parent=1 // pred_fallthru
      _
    // Predicated region
    $region10: #{tpu_custom_call.1} parent=1 // pred_check
      _
    $region11: #{tpu_custom_call.1} parent=1 // pred_check_branch
      %37 = sbr.rel (0) target = $region13
    $region12: #{tpu_custom_call.1} parent=1 // pred_region
      _
    $region13: #{tpu_custom_call.1} parent=1 // pred_fallthru
      _
    // Predicated region
    $region14: #{tpu_custom_call.1} parent=1 // pred_check
      _
    $region15: #{tpu_custom_call.1} parent=1 // pred_check_branch
      %39 = sbr.rel (0) target = $region17
    $region16: #{tpu_custom_call.1} parent=1 // pred_region
      %s41 = ssub.s32 2048, 2048
      %42 = vsyncadd [#allocation5], %s41
      %s43 = sshll.u32 [#allocation4], 4
      %s44 = int_to_ptr.vmem [resolvable:$true] %s43
      %49 = dma.hbm_to_vmem [thread:$0]  %s3, 2048, %s44, [#allocation5], 128, 128, 8
    $region17: #{tpu_custom_call.1} parent=1 // pred_fallthru
      _
    // Predicated region
    $region18: #{tpu_custom_call.1} parent=1 // pred_check
      _
    $region19: #{tpu_custom_call.1} parent=1 // pred_check_branch
      %51 = sbr.rel (0) target = $region21
    $region20: #{tpu_custom_call.1} parent=1 // pred_region
      _
    $region21: #{tpu_custom_call.1} parent=1 // pred_fallthru
      _
    // Predicated region
    $region22: #{tpu_custom_call.1} parent=1 // pred_check
      _
    $region23: #{tpu_custom_call.1} parent=1 // pred_check_branch
      %53 = sbr.rel (0) target = $region25
    $region24: #{tpu_custom_call.1} parent=1 // pred_region
      %s55 = ssub.s32 2048, 2048
      %56 = vsyncadd [#allocation5], %s55
      %s57 = sshll.u32 [#allocation6], 4
      %s58 = int_to_ptr.vmem [resolvable:$true] %s57
      %63 = dma.hbm_to_vmem [thread:$0]  %s5, 2048, %s58, [#allocation5], 128, 128, 8
    $region25: #{tpu_custom_call.1} parent=1 // pred_fallthru
      _
    // Predicated region
    $region26: #{tpu_custom_call.1} parent=1 // pred_check
      _
    $region27: #{tpu_custom_call.1} parent=1 // pred_check_branch
      %65 = sbr.rel (0) target = $region29
    $region28: #{tpu_custom_call.1} parent=1 // pred_region
      %s67 = ssub.s32 16, 16
      %68 = vsyncadd [#allocation8], %s67
      %s70 = sshll.u32 [#allocation7], 4
      %s71 = int_to_ptr.vmem [resolvable:$true] %s70
      %73 = dma.hbm_to_vmem [thread:$0]  %s6, 16, %s71, [#allocation8]
    $region29: #{tpu_custom_call.1} parent=1 // pred_fallthru
      _
    // Predicated region
    $region30: #{tpu_custom_call.1} parent=1 // pred_check
      _
    $region31: #{tpu_custom_call.1} parent=1 // pred_check_branch
      %75 = sbr.rel (0) target = $region33
    $region32: #{tpu_custom_call.1} parent=1 // pred_region
      %s77 = ssub.s32 2048, 2048
      %78 = vsyncadd [#allocation8], %s77
      %s79 = sshll.u32 [#allocation9], 4
      %s80 = int_to_ptr.vmem [resolvable:$true] %s79
      %85 = dma.hbm_to_vmem [thread:$0]  %s7, 2048, %s80, [#allocation8], 128, 128, 8
    $region33: #{tpu_custom_call.1} parent=1 // pred_fallthru
      _
    // Predicated region
    $region34: #{tpu_custom_call.1} parent=1 // pred_check
      _
    $region35: #{tpu_custom_call.1} parent=1 // pred_check_branch
      %87 = sbr.rel (0) target = $region37
    $region36: #{tpu_custom_call.1} parent=1 // pred_region
      %s89 = ssub.s32 16, 16
      %90 = vsyncadd [#allocation11], %s89
      %s92 = sshll.u32 [#allocation10], 4
      %s93 = int_to_ptr.vmem [resolvable:$true] %s92
      %95 = dma.hbm_to_vmem [thread:$0]  %s8, 16, %s93, [#allocation11]
    $region37: #{tpu_custom_call.1} parent=1 // pred_fallthru
      _
    // Predicated region
    $region38: #{tpu_custom_call.1} parent=1 // pred_check
      _
    $region39: #{tpu_custom_call.1} parent=1 // pred_check_branch
      %97 = sbr.rel (0) target = $region41
    $region40: #{tpu_custom_call.1} parent=1 // pred_region
      _
    $region41: #{tpu_custom_call.1} parent=1 // pred_fallthru
      _
    // Predicated region
    $region42: #{tpu_custom_call.1} parent=1 // pred_check
      _
    $region43: #{tpu_custom_call.1} parent=1 // pred_check_branch
      %99 = sbr.rel (0) target = $region45
    $region44: #{tpu_custom_call.1} parent=1 // pred_region
      _
    $region45: #{tpu_custom_call.1} parent=1 // pred_fallthru
      _
    // Predicated region
    $region46: #{tpu_custom_call.1} parent=1 // pred_check
      _
    $region47: #{tpu_custom_call.1} parent=1 // pred_check_branch
      %101 = sbr.rel (0) target = $region49
    $region48: #{tpu_custom_call.1} parent=1 // pred_region
      %s103 = ssub.s32 2048, 2048
      %104 = vsyncadd [#allocation11], %s103
      %s105 = sshll.u32 [#allocation12], 4
      %s106 = int_to_ptr.vmem [resolvable:$true] %s105
      %111 = dma.hbm_to_vmem [thread:$0]  %s11, 2048, %s106, [#allocation11], 128, 128, 8
    $region49: #{tpu_custom_call.1} parent=1 // pred_fallthru
      _
    // Predicated region
    $region50: #{tpu_custom_call.1} parent=1 // pred_check
      _
    $region51: #{tpu_custom_call.1} parent=1 // pred_check_branch
      %113 = sbr.rel (0) target = $region53
    $region52: #{tpu_custom_call.1} parent=1 // pred_region
      _
    $region53: #{tpu_custom_call.1} parent=1 // pred_fallthru
      _
    // Predicated region
    $region54: #{tpu_custom_call.1} parent=1 // pred_check
      _
    $region55: #{tpu_custom_call.1} parent=1 // pred_check_branch
      %115 = sbr.rel (0) target = $region57
    $region56: #{tpu_custom_call.1} parent=1 // pred_region
      %116 = dma.done [#allocation3], 512
    $region57: #{tpu_custom_call.1} parent=1 // pred_fallthru
      _
    // Predicated region
    $region58: #{tpu_custom_call.1} parent=1 // pred_check
      _
    $region59: #{tpu_custom_call.1} parent=1 // pred_check_branch
      %118 = sbr.rel (0) target = $region61
    $region60: #{tpu_custom_call.1} parent=1 // pred_region
      %119 = dma.done [#allocation5], 2048
    $region61: #{tpu_custom_call.1} parent=1 // pred_fallthru
      _
    // Predicated region
    $region62: #{tpu_custom_call.1} parent=1 // pred_check
      _
    $region63: #{tpu_custom_call.1} parent=1 // pred_check_branch
      %121 = sbr.rel (0) target = $region65
    $region64: #{tpu_custom_call.1} parent=1 // pred_region
      %122 = dma.done [#allocation5], 2048
    $region65: #{tpu_custom_call.1} parent=1 // pred_fallthru
      _
    // Predicated region
    $region66: #{tpu_custom_call.1} parent=1 // pred_check
      _
    $region67: #{tpu_custom_call.1} parent=1 // pred_check_branch
      %124 = sbr.rel (0) target = $region69
    $region68: #{tpu_custom_call.1} parent=1 // pred_region
      %125 = dma.done [#allocation8], 16
    $region69: #{tpu_custom_call.1} parent=1 // pred_fallthru
      _
    // Predicated region
    $region70: #{tpu_custom_call.1} parent=1 // pred_check
      _
    $region71: #{tpu_custom_call.1} parent=1 // pred_check_branch
      %127 = sbr.rel (0) target = $region73
    $region72: #{tpu_custom_call.1} parent=1 // pred_region
      %128 = dma.done [#allocation8], 2048
    $region73: #{tpu_custom_call.1} parent=1 // pred_fallthru
      _
    // Predicated region
    $region74: #{tpu_custom_call.1} parent=1 // pred_check
      _
    $region75: #{tpu_custom_call.1} parent=1 // pred_check_branch
      %130 = sbr.rel (0) target = $region77
    $region76: #{tpu_custom_call.1} parent=1 // pred_region
      %131 = dma.done [#allocation11], 16
    $region77: #{tpu_custom_call.1} parent=1 // pred_fallthru
      _
    // Predicated region
    $region78: #{tpu_custom_call.1} parent=1 // pred_check
      _
    $region79: #{tpu_custom_call.1} parent=1 // pred_check_branch
      %133 = sbr.rel (0) target = $region81
    $region80: #{tpu_custom_call.1} parent=1 // pred_region
      %134 = dma.done [#allocation11], 2048
    $region81: #{tpu_custom_call.1} parent=1 // pred_fallthru
      _
    %v135 = vld [vmem:[%s0] sm:$0xff]
    %v136 = vld [vmem:[%s0 + $0x8] sm:$0xff]
    %v137 = vld [vmem:[%s0 + $0x10] sm:$0xff]
    %v138 = vld [vmem:[%s0 + $0x18] sm:$0xff]
    %v139 = vld [vmem:[%s0 + $0x20] sm:$0xff]
    %v140 = vld [vmem:[%s0 + $0x28] sm:$0xff]
    %v141 = vld [vmem:[%s0 + $0x30] sm:$0xff]
    %v142 = vld [vmem:[%s0 + $0x38] sm:$0xff]
    %v143 = vld [vmem:[#allocation2] sm:$0xff]
    %v144 = vld [vmem:[#allocation2 + $0x8] sm:$0xff]
    %v145 = vld [vmem:[#allocation2 + $0x10] sm:$0xff]
    %v146 = vld [vmem:[#allocation2 + $0x18] sm:$0xff]
    %v147 = vld [vmem:[%s2] sm:$0x1]
    %v149 = vlaneseq
    %v150 = vshrl.u32 %v149, 7
    %v151 = vsub.s32 0, %v150
    %v152 = vrot.slane %v147, %v151
    %vm154 = vcmask 261120
    %v156 = vsel %vm154, %v135, 0
    %v159 = vsel %vm154, %v136, 0
    %v162 = vsel %vm154, %v137, 0
    %v165 = vsel %vm154, %v138, 0
    %v168 = vsel %vm154, %v139, 0
    %v171 = vsel %vm154, %v140, 0
    %v174 = vsel %vm154, %v141, 0
    %v177 = vsel %vm154, %v142, 0
    %179 = vmatprep.subr.mxu0 0.0
    %180 = vmatpush1.msra.mxu0 %v143
    %181 = vmatprep.subr.mxu0 0.0
    %182 = vmatpush1.msra.mxu0 %v144
    %183 = vmatprep.subr.mxu0 0.0
    %184 = vmatpush1.msra.mxu0 %v145
    %185 = vmatprep.subr.mxu0 0.0
    %186 = vmatpush1.msra.mxu0 %v146
    %187 = vmatprep.subr.mxu0 0.0
    %188 = vmatpush1.msra.mxu0 0.0
    %189 = vmatprep.subr.mxu0 0.0
    %190 = vmatpush1.msra.mxu0 0.0
    %191 = vmatprep.subr.mxu0 0.0
    %192 = vmatpush1.msra.mxu0 0.0
    %193 = vmatprep.subr.mxu0 0.0
    %194 = vmatpush1.msra.mxu0 0.0
    %195 = vmatprep.subr.mxu0 0.0
    %196 = vmatpush1.msra.mxu0 0.0
    %197 = vmatprep.subr.mxu0 0.0
    %198 = vmatpush1.msra.mxu0 0.0
    %199 = vmatprep.subr.mxu0 0.0
    %200 = vmatpush1.msra.mxu0 0.0
    %201 = vmatprep.subr.mxu0 0.0
    %202 = vmatpush1.msra.mxu0 0.0
    %203 = vmatprep.subr.mxu0 0.0
    %204 = vmatpush1.msra.mxu0 0.0
    %205 = vmatprep.subr.mxu0 0.0
    %206 = vmatpush1.msra.mxu0 0.0
    %207 = vmatprep.subr.mxu0 0.0
    %208 = vmatpush1.msra.mxu0 0.0
    %209 = vmatprep.subr.mxu0 0.0
    %210 = vmatpush1.msra.mxu0 0.0
    %211 = vmatprep.subr.mxu0 0.0
    %212 = vmatpush1.msra.mxu0 0.0
    %213 = vmatprep.subr.mxu0 0.0
    %214 = vmatpush1.msra.mxu0 0.0
    %215 = vmatprep.subr.mxu0 0.0
    %216 = vmatpush1.msra.mxu0 0.0
    %217 = vmatprep.subr.mxu0 0.0
    %218 = vmatpush1.msra.mxu0 0.0
    %219 = vmatprep.subr.mxu0 0.0
    %220 = vmatpush1.msra.mxu0 0.0
    %221 = vmatprep.subr.mxu0 0.0
    %222 = vmatpush1.msra.mxu0 0.0
    %223 = vmatprep.subr.mxu0 0.0
    %224 = vmatpush1.msra.mxu0 0.0
    %225 = vmatprep.subr.mxu0 0.0
    %226 = vmatpush1.msra.mxu0 0.0
    %227 = vmatprep.subr.mxu0 0.0
    %228 = vmatpush1.msra.mxu0 0.0
    %229 = vmatprep.subr.mxu0 0.0
    %230 = vmatpush1.msra.mxu0 0.0
    %231 = vmatprep.subr.mxu0 0.0
    %232 = vmatpush1.msra.mxu0 0.0
    %233 = vmatprep.subr.mxu0 0.0
    %234 = vmatpush1.msra.mxu0 0.0
    %235 = vmatprep.subr.mxu0 0.0
    %236 = vmatpush1.msra.mxu0 0.0
    %237 = vmatprep.subr.mxu0 0.0
    %238 = vmatpush1.msra.mxu0 0.0
    %239 = vmatprep.subr.mxu0 0.0
    %240 = vmatpush1.msra.mxu0 0.0
    %241 = vmatprep.subr.mxu0 0.0
    %242 = vmatpush1.msra.mxu0 0.0
    %243 = vmatprep.mubr.f32.mxu0 0.0
    %244 = vmatmul.mubr.f32.gmra.mrb[0].mxu0 %v156
    %v245 = vpop.f32.mrb[0].mxu0
    %v246 = vadd.f32 %v152, %v245
    %v247 = vpop.f32.mrb[0].mxu0
    %248 = vmatprep.mubr.f32.mxu0 0.0
    %249 = vmatmul.mubr.f32.gmra.mrb[0].mxu0 %v159
    %v250 = vpop.f32.mrb[0].mxu0
    %v251 = vadd.f32 %v152, %v250
    %v252 = vpop.f32.mrb[0].mxu0
    %253 = vmatprep.mubr.f32.mxu0 0.0
    %254 = vmatmul.mubr.f32.gmra.mrb[0].mxu0 %v162
    %v255 = vpop.f32.mrb[0].mxu0
    %v256 = vadd.f32 %v152, %v255
    %v257 = vpop.f32.mrb[0].mxu0
    %258 = vmatprep.mubr.f32.mxu0 0.0
    %259 = vmatmul.mubr.f32.gmra.mrb[0].mxu0 %v165
    %v260 = vpop.f32.mrb[0].mxu0
    %v261 = vadd.f32 %v152, %v260
    %v262 = vpop.f32.mrb[0].mxu0
    %263 = vmatprep.mubr.f32.mxu0 0.0
    %264 = vmatmul.mubr.f32.gmra.mrb[0].mxu0 %v168
    %v265 = vpop.f32.mrb[0].mxu0
    %v266 = vadd.f32 %v152, %v265
    %v267 = vpop.f32.mrb[0].mxu0
    %268 = vmatprep.mubr.f32.mxu0 0.0
    %269 = vmatmul.mubr.f32.gmra.mrb[0].mxu0 %v171
    %v270 = vpop.f32.mrb[0].mxu0
    %v271 = vadd.f32 %v152, %v270
    %v272 = vpop.f32.mrb[0].mxu0
    %273 = vmatprep.mubr.f32.mxu0 0.0
    %274 = vmatmul.mubr.f32.gmra.mrb[0].mxu0 %v174
    %v275 = vpop.f32.mrb[0].mxu0
    %v276 = vadd.f32 %v152, %v275
    %v277 = vpop.f32.mrb[0].mxu0
    %278 = vmatprep.mubr.f32.mxu0 0.0
    %279 = vmatmul.mubr.f32.gmra.mrb[0].mxu0 %v177
    %v280 = vpop.f32.mrb[0].mxu0
    %v281 = vadd.f32 %v152, %v280
    %v282 = vpop.f32.mrb[0].mxu0
    %283 = vdwg.mxu0
    %v284 = vmax.f32 %v246, 0.0
    %v285 = vmax.f32 %v251, 0.0
    %v286 = vmax.f32 %v256, 0.0
    %v287 = vmax.f32 %v261, 0.0
    %v288 = vmax.f32 %v266, 0.0
    %v289 = vmax.f32 %v271, 0.0
    %v290 = vmax.f32 %v276, 0.0
    %v291 = vmax.f32 %v281, 0.0
    %v292 = vld [vmem:[#allocation4] sm:$0xff]
    %v293 = vld [vmem:[#allocation4 + $0x8] sm:$0xff]
    %v294 = vld [vmem:[#allocation4 + $0x10] sm:$0xff]
    %v295 = vld [vmem:[#allocation4 + $0x18] sm:$0xff]
    %v296 = vld [vmem:[#allocation4 + $0x20] sm:$0xff]
    %v297 = vld [vmem:[#allocation4 + $0x28] sm:$0xff]
    %v298 = vld [vmem:[#allocation4 + $0x30] sm:$0xff]
    %v299 = vld [vmem:[#allocation4 + $0x38] sm:$0xff]
    %v300 = vld [vmem:[#allocation4 + $0x40] sm:$0xff]
    %v301 = vld [vmem:[#allocation4 + $0x48] sm:$0xff]
    %v302 = vld [vmem:[#allocation4 + $0x50] sm:$0xff]
    %v303 = vld [vmem:[#allocation4 + $0x58] sm:$0xff]
    %v304 = vld [vmem:[#allocation4 + $0x60] sm:$0xff]
    %v305 = vld [vmem:[#allocation4 + $0x68] sm:$0xff]
    %v306 = vld [vmem:[#allocation4 + $0x70] sm:$0xff]
    %v307 = vld [vmem:[#allocation4 + $0x78] sm:$0xff]
    %v308 = vld [vmem:[%s4] sm:$0x1]
    %v310 = vlaneseq
    %v311 = vshrl.u32 %v310, 7
    %v312 = vsub.s32 0, %v311
    %v313 = vrot.slane %v308, %v312
    %315 = vmatprep.subr.mxu0 0.0
    %316 = vmatpush1.msra.mxu0 %v292
    %317 = vmatprep.subr.mxu0 0.0
    %318 = vmatpush1.msra.mxu0 %v293
    %319 = vmatprep.subr.mxu0 0.0
    %320 = vmatpush1.msra.mxu0 %v294
    %321 = vmatprep.subr.mxu0 0.0
    %322 = vmatpush1.msra.mxu0 %v295
    %323 = vmatprep.subr.mxu0 0.0
    %324 = vmatpush1.msra.mxu0 %v296
    %325 = vmatprep.subr.mxu0 0.0
    %326 = vmatpush1.msra.mxu0 %v297
    %327 = vmatprep.subr.mxu0 0.0
    %328 = vmatpush1.msra.mxu0 %v298
    %329 = vmatprep.subr.mxu0 0.0
    %330 = vmatpush1.msra.mxu0 %v299
    %331 = vmatprep.subr.mxu0 0.0
    %332 = vmatpush1.msra.mxu0 %v300
    %333 = vmatprep.subr.mxu0 0.0
    %334 = vmatpush1.msra.mxu0 %v301
    %335 = vmatprep.subr.mxu0 0.0
    %336 = vmatpush1.msra.mxu0 %v302
    %337 = vmatprep.subr.mxu0 0.0
    %338 = vmatpush1.msra.mxu0 %v303
    %339 = vmatprep.subr.mxu0 0.0
    %340 = vmatpush1.msra.mxu0 %v304
    %341 = vmatprep.subr.mxu0 0.0
    %342 = vmatpush1.msra.mxu0 %v305
    %343 = vmatprep.subr.mxu0 0.0
    %344 = vmatpush1.msra.mxu0 %v306
    %345 = vmatprep.subr.mxu0 0.0
    %346 = vmatpush1.msra.mxu0 %v307
    %347 = vmatprep.subr.mxu0 0.0
    %348 = vmatpush1.msra.mxu0 0.0
    %349 = vmatprep.subr.mxu0 0.0
    %350 = vmatpush1.msra.mxu0 0.0
    %351 = vmatprep.subr.mxu0 0.0
    %352 = vmatpush1.msra.mxu0 0.0
    %353 = vmatprep.subr.mxu0 0.0
    %354 = vmatpush1.msra.mxu0 0.0
    %355 = vmatprep.subr.mxu0 0.0
    %356 = vmatpush1.msra.mxu0 0.0
    %357 = vmatprep.subr.mxu0 0.0
    %358 = vmatpush1.msra.mxu0 0.0
    %359 = vmatprep.subr.mxu0 0.0
    %360 = vmatpush1.msra.mxu0 0.0
    %361 = vmatprep.subr.mxu0 0.0
    %362 = vmatpush1.msra.mxu0 0.0
    %363 = vmatprep.subr.mxu0 0.0
    %364 = vmatpush1.msra.mxu0 0.0
    %365 = vmatprep.subr.mxu0 0.0
    %366 = vmatpush1.msra.mxu0 0.0
    %367 = vmatprep.subr.mxu0 0.0
    %368 = vmatpush1.msra.mxu0 0.0
    %369 = vmatprep.subr.mxu0 0.0
    %370 = vmatpush1.msra.mxu0 0.0
    %371 = vmatprep.subr.mxu0 0.0
    %372 = vmatpush1.msra.mxu0 0.0
    %373 = vmatprep.subr.mxu0 0.0
    %374 = vmatpush1.msra.mxu0 0.0
    %375 = vmatprep.subr.mxu0 0.0
    %376 = vmatpush1.msra.mxu0 0.0
    %377 = vmatprep.subr.mxu0 0.0
    %378 = vmatpush1.msra.mxu0 0.0
    %379 = vmatprep.mubr.f32.mxu0 0.0
    %380 = vmatmul.mubr.f32.gmra.mrb[0].mxu0 %v284
    %v381 = vpop.f32.mrb[0].mxu0
    %v382 = vadd.f32 %v313, %v381
    %v383 = vpop.f32.mrb[0].mxu0
    %384 = vmatprep.mubr.f32.mxu0 0.0
    %385 = vmatmul.mubr.f32.gmra.mrb[0].mxu0 %v285
    %v386 = vpop.f32.mrb[0].mxu0
    %v387 = vadd.f32 %v313, %v386
    %v388 = vpop.f32.mrb[0].mxu0
    %389 = vmatprep.mubr.f32.mxu0 0.0
    %390 = vmatmul.mubr.f32.gmra.mrb[0].mxu0 %v286
    %v391 = vpop.f32.mrb[0].mxu0
    %v392 = vadd.f32 %v313, %v391
    %v393 = vpop.f32.mrb[0].mxu0
    %394 = vmatprep.mubr.f32.mxu0 0.0
    %395 = vmatmul.mubr.f32.gmra.mrb[0].mxu0 %v287
    %v396 = vpop.f32.mrb[0].mxu0
    %v397 = vadd.f32 %v313, %v396
    %v398 = vpop.f32.mrb[0].mxu0
    %399 = vmatprep.mubr.f32.mxu0 0.0
    %400 = vmatmul.mubr.f32.gmra.mrb[0].mxu0 %v288
    %v401 = vpop.f32.mrb[0].mxu0
    %v402 = vadd.f32 %v313, %v401
    %v403 = vpop.f32.mrb[0].mxu0
    %404 = vmatprep.mubr.f32.mxu0 0.0
    %405 = vmatmul.mubr.f32.gmra.mrb[0].mxu0 %v289
    %v406 = vpop.f32.mrb[0].mxu0
    %v407 = vadd.f32 %v313, %v406
    %v408 = vpop.f32.mrb[0].mxu0
    %409 = vmatprep.mubr.f32.mxu0 0.0
    %410 = vmatmul.mubr.f32.gmra.mrb[0].mxu0 %v290
    %v411 = vpop.f32.mrb[0].mxu0
    %v412 = vadd.f32 %v313, %v411
    %v413 = vpop.f32.mrb[0].mxu0
    %414 = vmatprep.mubr.f32.mxu0 0.0
    %415 = vmatmul.mubr.f32.gmra.mrb[0].mxu0 %v291
    %v416 = vpop.f32.mrb[0].mxu0
    %v417 = vadd.f32 %v313, %v416
    %v418 = vpop.f32.mrb[0].mxu0
    %419 = vdwg.mxu0
    %v420 = vmax.f32 %v382, 0.0
    %v421 = vmax.f32 %v387, 0.0
    %v422 = vmax.f32 %v392, 0.0
    %v423 = vmax.f32 %v397, 0.0
    %v424 = vmax.f32 %v402, 0.0
    %v425 = vmax.f32 %v407, 0.0
    %v426 = vmax.f32 %v412, 0.0
    %v427 = vmax.f32 %v417, 0.0
    %v428 = vld [vmem:[#allocation6] sm:$0xff]
    %v429 = vld [vmem:[#allocation6 + $0x8] sm:$0xff]
    %v430 = vld [vmem:[#allocation6 + $0x10] sm:$0xff]
    %v431 = vld [vmem:[#allocation6 + $0x18] sm:$0xff]
    %v432 = vld [vmem:[#allocation6 + $0x20] sm:$0xff]
    %v433 = vld [vmem:[#allocation6 + $0x28] sm:$0xff]
    %v434 = vld [vmem:[#allocation6 + $0x30] sm:$0xff]
    %v435 = vld [vmem:[#allocation6 + $0x38] sm:$0xff]
    %v436 = vld [vmem:[#allocation6 + $0x40] sm:$0xff]
    %v437 = vld [vmem:[#allocation6 + $0x48] sm:$0xff]
    %v438 = vld [vmem:[#allocation6 + $0x50] sm:$0xff]
    %v439 = vld [vmem:[#allocation6 + $0x58] sm:$0xff]
    %v440 = vld [vmem:[#allocation6 + $0x60] sm:$0xff]
    %v441 = vld [vmem:[#allocation6 + $0x68] sm:$0xff]
    %v442 = vld [vmem:[#allocation6 + $0x70] sm:$0xff]
    %v443 = vld [vmem:[#allocation6 + $0x78] sm:$0xff]
    %v444 = vld [vmem:[#allocation7] sm:$0x1]
    %v446 = vlaneseq
    %v447 = vshrl.u32 %v446, 7
    %v448 = vsub.s32 0, %v447
    %v449 = vrot.slane %v444, %v448
    %451 = vmatprep.subr.mxu0 0.0
    %452 = vmatpush1.msra.mxu0 %v428
    %453 = vmatprep.subr.mxu0 0.0
    %454 = vmatpush1.msra.mxu0 %v429
    %455 = vmatprep.subr.mxu0 0.0
    %456 = vmatpush1.msra.mxu0 %v430
    %457 = vmatprep.subr.mxu0 0.0
    %458 = vmatpush1.msra.mxu0 %v431
    %459 = vmatprep.subr.mxu0 0.0
    %460 = vmatpush1.msra.mxu0 %v432
    %461 = vmatprep.subr.mxu0 0.0
    %462 = vmatpush1.msra.mxu0 %v433
    %463 = vmatprep.subr.mxu0 0.0
    %464 = vmatpush1.msra.mxu0 %v434
    %465 = vmatprep.subr.mxu0 0.0
    %466 = vmatpush1.msra.mxu0 %v435
    %467 = vmatprep.subr.mxu0 0.0
    %468 = vmatpush1.msra.mxu0 %v436
    %469 = vmatprep.subr.mxu0 0.0
    %470 = vmatpush1.msra.mxu0 %v437
    %471 = vmatprep.subr.mxu0 0.0
    %472 = vmatpush1.msra.mxu0 %v438
    %473 = vmatprep.subr.mxu0 0.0
    %474 = vmatpush1.msra.mxu0 %v439
    %475 = vmatprep.subr.mxu0 0.0
    %476 = vmatpush1.msra.mxu0 %v440
    %477 = vmatprep.subr.mxu0 0.0
    %478 = vmatpush1.msra.mxu0 %v441
    %479 = vmatprep.subr.mxu0 0.0
    %480 = vmatpush1.msra.mxu0 %v442
    %481 = vmatprep.subr.mxu0 0.0
    %482 = vmatpush1.msra.mxu0 %v443
    %483 = vmatprep.subr.mxu0 0.0
    %484 = vmatpush1.msra.mxu0 0.0
    %485 = vmatprep.subr.mxu0 0.0
    %486 = vmatpush1.msra.mxu0 0.0
    %487 = vmatprep.subr.mxu0 0.0
    %488 = vmatpush1.msra.mxu0 0.0
    %489 = vmatprep.subr.mxu0 0.0
    %490 = vmatpush1.msra.mxu0 0.0
    %491 = vmatprep.subr.mxu0 0.0
    %492 = vmatpush1.msra.mxu0 0.0
    %493 = vmatprep.subr.mxu0 0.0
    %494 = vmatpush1.msra.mxu0 0.0
    %495 = vmatprep.subr.mxu0 0.0
    %496 = vmatpush1.msra.mxu0 0.0
    %497 = vmatprep.subr.mxu0 0.0
    %498 = vmatpush1.msra.mxu0 0.0
    %499 = vmatprep.subr.mxu0 0.0
    %500 = vmatpush1.msra.mxu0 0.0
    %501 = vmatprep.subr.mxu0 0.0
    %502 = vmatpush1.msra.mxu0 0.0
    %503 = vmatprep.subr.mxu0 0.0
    %504 = vmatpush1.msra.mxu0 0.0
    %505 = vmatprep.subr.mxu0 0.0
    %506 = vmatpush1.msra.mxu0 0.0
    %507 = vmatprep.subr.mxu0 0.0
    %508 = vmatpush1.msra.mxu0 0.0
    %509 = vmatprep.subr.mxu0 0.0
    %510 = vmatpush1.msra.mxu0 0.0
    %511 = vmatprep.subr.mxu0 0.0
    %512 = vmatpush1.msra.mxu0 0.0
    %513 = vmatprep.subr.mxu0 0.0
    %514 = vmatpush1.msra.mxu0 0.0
    %515 = vmatprep.mubr.f32.mxu0 0.0
    %516 = vmatmul.mubr.f32.gmra.mrb[0].mxu0 %v420
    %v517 = vpop.f32.mrb[0].mxu0
    %v518 = vadd.f32 %v449, %v517
    %v519 = vpop.f32.mrb[0].mxu0
    %520 = vmatprep.mubr.f32.mxu0 0.0
    %521 = vmatmul.mubr.f32.gmra.mrb[0].mxu0 %v421
    %v522 = vpop.f32.mrb[0].mxu0
    %v523 = vadd.f32 %v449, %v522
    %v524 = vpop.f32.mrb[0].mxu0
    %525 = vmatprep.mubr.f32.mxu0 0.0
    %526 = vmatmul.mubr.f32.gmra.mrb[0].mxu0 %v422
    %v527 = vpop.f32.mrb[0].mxu0
    %v528 = vadd.f32 %v449, %v527
    %v529 = vpop.f32.mrb[0].mxu0
    %530 = vmatprep.mubr.f32.mxu0 0.0
    %531 = vmatmul.mubr.f32.gmra.mrb[0].mxu0 %v423
    %v532 = vpop.f32.mrb[0].mxu0
    %v533 = vadd.f32 %v449, %v532
    %v534 = vpop.f32.mrb[0].mxu0
    %535 = vmatprep.mubr.f32.mxu0 0.0
    %536 = vmatmul.mubr.f32.gmra.mrb[0].mxu0 %v424
    %v537 = vpop.f32.mrb[0].mxu0
    %v538 = vadd.f32 %v449, %v537
    %v539 = vpop.f32.mrb[0].mxu0
    %540 = vmatprep.mubr.f32.mxu0 0.0
    %541 = vmatmul.mubr.f32.gmra.mrb[0].mxu0 %v425
    %v542 = vpop.f32.mrb[0].mxu0
    %v543 = vadd.f32 %v449, %v542
    %v544 = vpop.f32.mrb[0].mxu0
    %545 = vmatprep.mubr.f32.mxu0 0.0
    %546 = vmatmul.mubr.f32.gmra.mrb[0].mxu0 %v426
    %v547 = vpop.f32.mrb[0].mxu0
    %v548 = vadd.f32 %v449, %v547
    %v549 = vpop.f32.mrb[0].mxu0
    %550 = vmatprep.mubr.f32.mxu0 0.0
    %551 = vmatmul.mubr.f32.gmra.mrb[0].mxu0 %v427
    %v552 = vpop.f32.mrb[0].mxu0
    %v553 = vadd.f32 %v449, %v552
    %v554 = vpop.f32.mrb[0].mxu0
    %555 = vdwg.mxu0
    %v556 = vmax.f32 %v518, 0.0
    %v557 = vmax.f32 %v523, 0.0
    %v558 = vmax.f32 %v528, 0.0
    %v559 = vmax.f32 %v533, 0.0
    %v560 = vmax.f32 %v538, 0.0
    %v561 = vmax.f32 %v543, 0.0
    %v562 = vmax.f32 %v548, 0.0
    %v563 = vmax.f32 %v553, 0.0
    %v564 = vld [vmem:[#allocation9] sm:$0xff]
    %v565 = vld [vmem:[#allocation9 + $0x8] sm:$0xff]
    %v566 = vld [vmem:[#allocation9 + $0x10] sm:$0xff]
    %v567 = vld [vmem:[#allocation9 + $0x18] sm:$0xff]
    %v568 = vld [vmem:[#allocation9 + $0x20] sm:$0xff]
    %v569 = vld [vmem:[#allocation9 + $0x28] sm:$0xff]
    %v570 = vld [vmem:[#allocation9 + $0x30] sm:$0xff]
    %v571 = vld [vmem:[#allocation9 + $0x38] sm:$0xff]
    %v572 = vld [vmem:[#allocation9 + $0x40] sm:$0xff]
    %v573 = vld [vmem:[#allocation9 + $0x48] sm:$0xff]
    %v574 = vld [vmem:[#allocation9 + $0x50] sm:$0xff]
    %v575 = vld [vmem:[#allocation9 + $0x58] sm:$0xff]
    %v576 = vld [vmem:[#allocation9 + $0x60] sm:$0xff]
    %v577 = vld [vmem:[#allocation9 + $0x68] sm:$0xff]
    %v578 = vld [vmem:[#allocation9 + $0x70] sm:$0xff]
    %v579 = vld [vmem:[#allocation9 + $0x78] sm:$0xff]
    %v580 = vld [vmem:[#allocation10] sm:$0x1]
    %v582 = vlaneseq
    %v583 = vshrl.u32 %v582, 7
    %v584 = vsub.s32 0, %v583
    %v585 = vrot.slane %v580, %v584
    %587 = vmatprep.subr.mxu0 0.0
    %588 = vmatpush1.msra.mxu0 %v564
    %589 = vmatprep.subr.mxu0 0.0
    %590 = vmatpush1.msra.mxu0 %v565
    %591 = vmatprep.subr.mxu0 0.0
    %592 = vmatpush1.msra.mxu0 %v566
    %593 = vmatprep.subr.mxu0 0.0
    %594 = vmatpush1.msra.mxu0 %v567
    %595 = vmatprep.subr.mxu0 0.0
    %596 = vmatpush1.msra.mxu0 %v568
    %597 = vmatprep.subr.mxu0 0.0
    %598 = vmatpush1.msra.mxu0 %v569
    %599 = vmatprep.subr.mxu0 0.0
    %600 = vmatpush1.msra.mxu0 %v570
    %601 = vmatprep.subr.mxu0 0.0
    %602 = vmatpush1.msra.mxu0 %v571
    %603 = vmatprep.subr.mxu0 0.0
    %604 = vmatpush1.msra.mxu0 %v572
    %605 = vmatprep.subr.mxu0 0.0
    %606 = vmatpush1.msra.mxu0 %v573
    %607 = vmatprep.subr.mxu0 0.0
    %608 = vmatpush1.msra.mxu0 %v574
    %609 = vmatprep.subr.mxu0 0.0
    %610 = vmatpush1.msra.mxu0 %v575
    %611 = vmatprep.subr.mxu0 0.0
    %612 = vmatpush1.msra.mxu0 %v576
    %613 = vmatprep.subr.mxu0 0.0
    %614 = vmatpush1.msra.mxu0 %v577
    %615 = vmatprep.subr.mxu0 0.0
    %616 = vmatpush1.msra.mxu0 %v578
    %617 = vmatprep.subr.mxu0 0.0
    %618 = vmatpush1.msra.mxu0 %v579
    %619 = vmatprep.subr.mxu0 0.0
    %620 = vmatpush1.msra.mxu0 0.0
    %621 = vmatprep.subr.mxu0 0.0
    %622 = vmatpush1.msra.mxu0 0.0
    %623 = vmatprep.subr.mxu0 0.0
    %624 = vmatpush1.msra.mxu0 0.0
    %625 = vmatprep.subr.mxu0 0.0
    %626 = vmatpush1.msra.mxu0 0.0
    %627 = vmatprep.subr.mxu0 0.0
    %628 = vmatpush1.msra.mxu0 0.0
    %629 = vmatprep.subr.mxu0 0.0
    %630 = vmatpush1.msra.mxu0 0.0
    %631 = vmatprep.subr.mxu0 0.0
    %632 = vmatpush1.msra.mxu0 0.0
    %633 = vmatprep.subr.mxu0 0.0
    %634 = vmatpush1.msra.mxu0 0.0
    %635 = vmatprep.subr.mxu0 0.0
    %636 = vmatpush1.msra.mxu0 0.0
    %637 = vmatprep.subr.mxu0 0.0
    %638 = vmatpush1.msra.mxu0 0.0
    %639 = vmatprep.subr.mxu0 0.0
    %640 = vmatpush1.msra.mxu0 0.0
    %641 = vmatprep.subr.mxu0 0.0
    %642 = vmatpush1.msra.mxu0 0.0
    %643 = vmatprep.subr.mxu0 0.0
    %644 = vmatpush1.msra.mxu0 0.0
    %645 = vmatprep.subr.mxu0 0.0
    %646 = vmatpush1.msra.mxu0 0.0
    %647 = vmatprep.subr.mxu0 0.0
    %648 = vmatpush1.msra.mxu0 0.0
    %649 = vmatprep.subr.mxu0 0.0
    %650 = vmatpush1.msra.mxu0 0.0
    %651 = vmatprep.mubr.f32.mxu0 0.0
    %652 = vmatmul.mubr.f32.gmra.mrb[0].mxu0 %v556
    %v653 = vpop.f32.mrb[0].mxu0
    %v654 = vadd.f32 %v585, %v653
    %v655 = vpop.f32.mrb[0].mxu0
    %656 = vmatprep.mubr.f32.mxu0 0.0
    %657 = vmatmul.mubr.f32.gmra.mrb[0].mxu0 %v557
    %v658 = vpop.f32.mrb[0].mxu0
    %v659 = vadd.f32 %v585, %v658
    %v660 = vpop.f32.mrb[0].mxu0
    %661 = vmatprep.mubr.f32.mxu0 0.0
    %662 = vmatmul.mubr.f32.gmra.mrb[0].mxu0 %v558
    %v663 = vpop.f32.mrb[0].mxu0
    %v664 = vadd.f32 %v585, %v663
    %v665 = vpop.f32.mrb[0].mxu0
    %666 = vmatprep.mubr.f32.mxu0 0.0
    %667 = vmatmul.mubr.f32.gmra.mrb[0].mxu0 %v559
    %v668 = vpop.f32.mrb[0].mxu0
    %v669 = vadd.f32 %v585, %v668
    %v670 = vpop.f32.mrb[0].mxu0
    %671 = vmatprep.mubr.f32.mxu0 0.0
    %672 = vmatmul.mubr.f32.gmra.mrb[0].mxu0 %v560
    %v673 = vpop.f32.mrb[0].mxu0
    %v674 = vadd.f32 %v585, %v673
    %v675 = vpop.f32.mrb[0].mxu0
    %676 = vmatprep.mubr.f32.mxu0 0.0
    %677 = vmatmul.mubr.f32.gmra.mrb[0].mxu0 %v561
    %v678 = vpop.f32.mrb[0].mxu0
    %v679 = vadd.f32 %v585, %v678
    %v680 = vpop.f32.mrb[0].mxu0
    %681 = vmatprep.mubr.f32.mxu0 0.0
    %682 = vmatmul.mubr.f32.gmra.mrb[0].mxu0 %v562
    %v683 = vpop.f32.mrb[0].mxu0
    %v684 = vadd.f32 %v585, %v683
    %v685 = vpop.f32.mrb[0].mxu0
    %686 = vmatprep.mubr.f32.mxu0 0.0
    %687 = vmatmul.mubr.f32.gmra.mrb[0].mxu0 %v563
    %v688 = vpop.f32.mrb[0].mxu0
    %v689 = vadd.f32 %v585, %v688
    %v690 = vpop.f32.mrb[0].mxu0
    %691 = vdwg.mxu0
    %v692 = vmax.f32 %v654, 0.0
    %v693 = vmax.f32 %v659, 0.0
    %v694 = vmax.f32 %v664, 0.0
    %v695 = vmax.f32 %v669, 0.0
    %v696 = vmax.f32 %v674, 0.0
    %v697 = vmax.f32 %v679, 0.0
    %v698 = vmax.f32 %v684, 0.0
    %v699 = vmax.f32 %v689, 0.0
    %v700 = vld [vmem:[%s9] sm:$0xff]
    %v701 = vld [vmem:[%s9 + $0x8] sm:$0xff]
    %v702 = vld [vmem:[%s9 + $0x10] sm:$0xff]
    %v703 = vld [vmem:[%s9 + $0x18] sm:$0xff]
    %v704 = vld [vmem:[%s9 + $0x20] sm:$0xff]
    %v705 = vld [vmem:[%s9 + $0x28] sm:$0xff]
    %v706 = vld [vmem:[%s9 + $0x30] sm:$0xff]
    %v707 = vld [vmem:[%s9 + $0x38] sm:$0xff]
    %v708 = vld [vmem:[%s9 + $0x40] sm:$0xff]
    %v709 = vld [vmem:[%s9 + $0x48] sm:$0xff]
    %v710 = vld [vmem:[%s9 + $0x50] sm:$0xff]
    %v711 = vld [vmem:[%s9 + $0x58] sm:$0xff]
    %v712 = vld [vmem:[%s9 + $0x60] sm:$0xff]
    %v713 = vld [vmem:[%s9 + $0x68] sm:$0xff]
    %v714 = vld [vmem:[%s9 + $0x70] sm:$0xff]
    %v715 = vld [vmem:[%s9 + $0x78] sm:$0xff]
    %v716 = vld [vmem:[%s10] sm:$0x1]
    %v718 = vlaneseq
    %v719 = vshrl.u32 %v718, 7
    %v720 = vsub.s32 0, %v719
    %v721 = vrot.slane %v716, %v720
    %723 = vmatprep.subr.mxu0 0.0
    %724 = vmatpush1.msra.mxu0 %v700
    %725 = vmatprep.subr.mxu0 0.0
    %726 = vmatpush1.msra.mxu0 %v701
    %727 = vmatprep.subr.mxu0 0.0
    %728 = vmatpush1.msra.mxu0 %v702
    %729 = vmatprep.subr.mxu0 0.0
    %730 = vmatpush1.msra.mxu0 %v703
    %731 = vmatprep.subr.mxu0 0.0
    %732 = vmatpush1.msra.mxu0 %v704
    %733 = vmatprep.subr.mxu0 0.0
    %734 = vmatpush1.msra.mxu0 %v705
    %735 = vmatprep.subr.mxu0 0.0
    %736 = vmatpush1.msra.mxu0 %v706
    %737 = vmatprep.subr.mxu0 0.0
    %738 = vmatpush1.msra.mxu0 %v707
    %739 = vmatprep.subr.mxu0 0.0
    %740 = vmatpush1.msra.mxu0 %v708
    %741 = vmatprep.subr.mxu0 0.0
    %742 = vmatpush1.msra.mxu0 %v709
    %743 = vmatprep.subr.mxu0 0.0
    %744 = vmatpush1.msra.mxu0 %v710
    %745 = vmatprep.subr.mxu0 0.0
    %746 = vmatpush1.msra.mxu0 %v711
    %747 = vmatprep.subr.mxu0 0.0
    %748 = vmatpush1.msra.mxu0 %v712
    %749 = vmatprep.subr.mxu0 0.0
    %750 = vmatpush1.msra.mxu0 %v713
    %751 = vmatprep.subr.mxu0 0.0
    %752 = vmatpush1.msra.mxu0 %v714
    %753 = vmatprep.subr.mxu0 0.0
    %754 = vmatpush1.msra.mxu0 %v715
    %755 = vmatprep.subr.mxu0 0.0
    %756 = vmatpush1.msra.mxu0 0.0
    %757 = vmatprep.subr.mxu0 0.0
    %758 = vmatpush1.msra.mxu0 0.0
    %759 = vmatprep.subr.mxu0 0.0
    %760 = vmatpush1.msra.mxu0 0.0
    %761 = vmatprep.subr.mxu0 0.0
    %762 = vmatpush1.msra.mxu0 0.0
    %763 = vmatprep.subr.mxu0 0.0
    %764 = vmatpush1.msra.mxu0 0.0
    %765 = vmatprep.subr.mxu0 0.0
    %766 = vmatpush1.msra.mxu0 0.0
    %767 = vmatprep.subr.mxu0 0.0
    %768 = vmatpush1.msra.mxu0 0.0
    %769 = vmatprep.subr.mxu0 0.0
    %770 = vmatpush1.msra.mxu0 0.0
    %771 = vmatprep.subr.mxu0 0.0
    %772 = vmatpush1.msra.mxu0 0.0
    %773 = vmatprep.subr.mxu0 0.0
    %774 = vmatpush1.msra.mxu0 0.0
    %775 = vmatprep.subr.mxu0 0.0
    %776 = vmatpush1.msra.mxu0 0.0
    %777 = vmatprep.subr.mxu0 0.0
    %778 = vmatpush1.msra.mxu0 0.0
    %779 = vmatprep.subr.mxu0 0.0
    %780 = vmatpush1.msra.mxu0 0.0
    %781 = vmatprep.subr.mxu0 0.0
    %782 = vmatpush1.msra.mxu0 0.0
    %783 = vmatprep.subr.mxu0 0.0
    %784 = vmatpush1.msra.mxu0 0.0
    %785 = vmatprep.subr.mxu0 0.0
    %786 = vmatpush1.msra.mxu0 0.0
    %787 = vmatprep.mubr.f32.mxu0 0.0
    %788 = vmatmul.mubr.f32.gmra.mrb[0].mxu0 %v692
    %v789 = vpop.f32.mrb[0].mxu0
    %v790 = vadd.f32 %v721, %v789
    %v791 = vpop.f32.mrb[0].mxu0
    %792 = vmatprep.mubr.f32.mxu0 0.0
    %793 = vmatmul.mubr.f32.gmra.mrb[0].mxu0 %v693
    %v794 = vpop.f32.mrb[0].mxu0
    %v795 = vadd.f32 %v721, %v794
    %v796 = vpop.f32.mrb[0].mxu0
    %797 = vmatprep.mubr.f32.mxu0 0.0
    %798 = vmatmul.mubr.f32.gmra.mrb[0].mxu0 %v694
    %v799 = vpop.f32.mrb[0].mxu0
    %v800 = vadd.f32 %v721, %v799
    %v801 = vpop.f32.mrb[0].mxu0
    %802 = vmatprep.mubr.f32.mxu0 0.0
    %803 = vmatmul.mubr.f32.gmra.mrb[0].mxu0 %v695
    %v804 = vpop.f32.mrb[0].mxu0
    %v805 = vadd.f32 %v721, %v804
    %v806 = vpop.f32.mrb[0].mxu0
    %807 = vmatprep.mubr.f32.mxu0 0.0
    %808 = vmatmul.mubr.f32.gmra.mrb[0].mxu0 %v696
    %v809 = vpop.f32.mrb[0].mxu0
    %v810 = vadd.f32 %v721, %v809
    %v811 = vpop.f32.mrb[0].mxu0
    %812 = vmatprep.mubr.f32.mxu0 0.0
    %813 = vmatmul.mubr.f32.gmra.mrb[0].mxu0 %v697
    %v814 = vpop.f32.mrb[0].mxu0
    %v815 = vadd.f32 %v721, %v814
    %v816 = vpop.f32.mrb[0].mxu0
    %817 = vmatprep.mubr.f32.mxu0 0.0
    %818 = vmatmul.mubr.f32.gmra.mrb[0].mxu0 %v698
    %v819 = vpop.f32.mrb[0].mxu0
    %v820 = vadd.f32 %v721, %v819
    %v821 = vpop.f32.mrb[0].mxu0
    %822 = vmatprep.mubr.f32.mxu0 0.0
    %823 = vmatmul.mubr.f32.gmra.mrb[0].mxu0 %v699
    %v824 = vpop.f32.mrb[0].mxu0
    %v825 = vadd.f32 %v721, %v824
    %v826 = vpop.f32.mrb[0].mxu0
    %827 = vdwg.mxu0
    %v828 = vmax.f32 %v790, 0.0
    %v829 = vmax.f32 %v795, 0.0
    %v830 = vmax.f32 %v800, 0.0
    %v831 = vmax.f32 %v805, 0.0
    %v832 = vmax.f32 %v810, 0.0
    %v833 = vmax.f32 %v815, 0.0
    %v834 = vmax.f32 %v820, 0.0
    %v835 = vmax.f32 %v825, 0.0
    %v836 = vld [vmem:[#allocation12] sm:$0xff]
    %v837 = vld [vmem:[#allocation12 + $0x8] sm:$0xff]
    %v838 = vld [vmem:[#allocation12 + $0x10] sm:$0xff]
    %v839 = vld [vmem:[#allocation12 + $0x18] sm:$0xff]
    %v840 = vld [vmem:[#allocation12 + $0x20] sm:$0xff]
    %v841 = vld [vmem:[#allocation12 + $0x28] sm:$0xff]
    %v842 = vld [vmem:[#allocation12 + $0x30] sm:$0xff]
    %v843 = vld [vmem:[#allocation12 + $0x38] sm:$0xff]
    %v844 = vld [vmem:[#allocation12 + $0x40] sm:$0xff]
    %v845 = vld [vmem:[#allocation12 + $0x48] sm:$0xff]
    %v846 = vld [vmem:[#allocation12 + $0x50] sm:$0xff]
    %v847 = vld [vmem:[#allocation12 + $0x58] sm:$0xff]
    %v848 = vld [vmem:[#allocation12 + $0x60] sm:$0xff]
    %v849 = vld [vmem:[#allocation12 + $0x68] sm:$0xff]
    %v850 = vld [vmem:[#allocation12 + $0x70] sm:$0xff]
    %v851 = vld [vmem:[#allocation12 + $0x78] sm:$0xff]
    %v852 = vld [vmem:[%s12] sm:$0x1]
    %v854 = vlaneseq
    %v855 = vshrl.u32 %v854, 7
    %v856 = vsub.s32 0, %v855
    %v857 = vrot.slane %v852, %v856
    %859 = vmatprep.subr.mxu0 0.0
    %860 = vmatpush1.msra.mxu0 %v836
    %861 = vmatprep.subr.mxu0 0.0
    %862 = vmatpush1.msra.mxu0 %v837
    %863 = vmatprep.subr.mxu0 0.0
    %864 = vmatpush1.msra.mxu0 %v838
    %865 = vmatprep.subr.mxu0 0.0
    %866 = vmatpush1.msra.mxu0 %v839
    %867 = vmatprep.subr.mxu0 0.0
    %868 = vmatpush1.msra.mxu0 %v840
    %869 = vmatprep.subr.mxu0 0.0
    %870 = vmatpush1.msra.mxu0 %v841
    %871 = vmatprep.subr.mxu0 0.0
    %872 = vmatpush1.msra.mxu0 %v842
    %873 = vmatprep.subr.mxu0 0.0
    %874 = vmatpush1.msra.mxu0 %v843
    %875 = vmatprep.subr.mxu0 0.0
    %876 = vmatpush1.msra.mxu0 %v844
    %877 = vmatprep.subr.mxu0 0.0
    %878 = vmatpush1.msra.mxu0 %v845
    %879 = vmatprep.subr.mxu0 0.0
    %880 = vmatpush1.msra.mxu0 %v846
    %881 = vmatprep.subr.mxu0 0.0
    %882 = vmatpush1.msra.mxu0 %v847
    %883 = vmatprep.subr.mxu0 0.0
    %884 = vmatpush1.msra.mxu0 %v848
    %885 = vmatprep.subr.mxu0 0.0
    %886 = vmatpush1.msra.mxu0 %v849
    %887 = vmatprep.subr.mxu0 0.0
    %888 = vmatpush1.msra.mxu0 %v850
    %889 = vmatprep.subr.mxu0 0.0
    %890 = vmatpush1.msra.mxu0 %v851
    %891 = vmatprep.subr.mxu0 0.0
    %892 = vmatpush1.msra.mxu0 0.0
    %893 = vmatprep.subr.mxu0 0.0
    %894 = vmatpush1.msra.mxu0 0.0
    %895 = vmatprep.subr.mxu0 0.0
    %896 = vmatpush1.msra.mxu0 0.0
    %897 = vmatprep.subr.mxu0 0.0
    %898 = vmatpush1.msra.mxu0 0.0
    %899 = vmatprep.subr.mxu0 0.0
    %900 = vmatpush1.msra.mxu0 0.0
    %901 = vmatprep.subr.mxu0 0.0
    %902 = vmatpush1.msra.mxu0 0.0
    %903 = vmatprep.subr.mxu0 0.0
    %904 = vmatpush1.msra.mxu0 0.0
    %905 = vmatprep.subr.mxu0 0.0
    %906 = vmatpush1.msra.mxu0 0.0
    %907 = vmatprep.subr.mxu0 0.0
    %908 = vmatpush1.msra.mxu0 0.0
    %909 = vmatprep.subr.mxu0 0.0
    %910 = vmatpush1.msra.mxu0 0.0
    %911 = vmatprep.subr.mxu0 0.0
    %912 = vmatpush1.msra.mxu0 0.0
    %913 = vmatprep.subr.mxu0 0.0
    %914 = vmatpush1.msra.mxu0 0.0
    %915 = vmatprep.subr.mxu0 0.0
    %916 = vmatpush1.msra.mxu0 0.0
    %917 = vmatprep.subr.mxu0 0.0
    %918 = vmatpush1.msra.mxu0 0.0
    %919 = vmatprep.subr.mxu0 0.0
    %920 = vmatpush1.msra.mxu0 0.0
    %921 = vmatprep.subr.mxu0 0.0
    %922 = vmatpush1.msra.mxu0 0.0
    %923 = vmatprep.mubr.f32.mxu0 0.0
    %924 = vmatmul.mubr.f32.gmra.mrb[0].mxu0 %v828
    %v925 = vpop.f32.mrb[0].mxu0
    %v926 = vadd.f32 %v857, %v925
    %v927 = vpop.f32.mrb[0].mxu0
    %928 = vmatprep.mubr.f32.mxu0 0.0
    %929 = vmatmul.mubr.f32.gmra.mrb[0].mxu0 %v829
    %v930 = vpop.f32.mrb[0].mxu0
    %v931 = vadd.f32 %v857, %v930
    %v932 = vpop.f32.mrb[0].mxu0
    %933 = vmatprep.mubr.f32.mxu0 0.0
    %934 = vmatmul.mubr.f32.gmra.mrb[0].mxu0 %v830
    %v935 = vpop.f32.mrb[0].mxu0
    %v936 = vadd.f32 %v857, %v935
    %v937 = vpop.f32.mrb[0].mxu0
    %938 = vmatprep.mubr.f32.mxu0 0.0
    %939 = vmatmul.mubr.f32.gmra.mrb[0].mxu0 %v831
    %v940 = vpop.f32.mrb[0].mxu0
    %v941 = vadd.f32 %v857, %v940
    %v942 = vpop.f32.mrb[0].mxu0
    %943 = vmatprep.mubr.f32.mxu0 0.0
    %944 = vmatmul.mubr.f32.gmra.mrb[0].mxu0 %v832
    %v945 = vpop.f32.mrb[0].mxu0
    %v946 = vadd.f32 %v857, %v945
    %v947 = vpop.f32.mrb[0].mxu0
    %948 = vmatprep.mubr.f32.mxu0 0.0
    %949 = vmatmul.mubr.f32.gmra.mrb[0].mxu0 %v833
    %v950 = vpop.f32.mrb[0].mxu0
    %v951 = vadd.f32 %v857, %v950
    %v952 = vpop.f32.mrb[0].mxu0
    %953 = vmatprep.mubr.f32.mxu0 0.0
    %954 = vmatmul.mubr.f32.gmra.mrb[0].mxu0 %v834
    %v955 = vpop.f32.mrb[0].mxu0
    %v956 = vadd.f32 %v857, %v955
    %v957 = vpop.f32.mrb[0].mxu0
    %958 = vmatprep.mubr.f32.mxu0 0.0
    %959 = vmatmul.mubr.f32.gmra.mrb[0].mxu0 %v835
    %v960 = vpop.f32.mrb[0].mxu0
    %v961 = vadd.f32 %v857, %v960
    %v962 = vpop.f32.mrb[0].mxu0
    %963 = vdwg.mxu0
    %vm964 = vcmask 15360
    %965 = vst.msk [vmem:[%s13] sm:$0xff] %vm964, %v926
    %966 = vst.msk [vmem:[%s13 + $0x8] sm:$0xff] %vm964, %v931
    %967 = vst.msk [vmem:[%s13 + $0x10] sm:$0xff] %vm964, %v936
    %968 = vst.msk [vmem:[%s13 + $0x18] sm:$0xff] %vm964, %v941
    %969 = vst.msk [vmem:[%s13 + $0x20] sm:$0xff] %vm964, %v946
    %970 = vst.msk [vmem:[%s13 + $0x28] sm:$0xff] %vm964, %v951
    %971 = vst.msk [vmem:[%s13 + $0x30] sm:$0xff] %vm964, %v956
    %972 = vst.msk [vmem:[%s13 + $0x38] sm:$0xff] %vm964, %v961
    // Predicated region
    $region82: #{tpu_custom_call.1} parent=1 // pred_check
      _
    $region83: #{tpu_custom_call.1} parent=1 // pred_check_branch
      %974 = sbr.rel (0) target = $region85
    $region84: #{tpu_custom_call.1} parent=1 // pred_region
      _
    $region85: #{tpu_custom_call.1} parent=1 // pred_fallthru
      _
    // Predicated region
    $region86: #{tpu_custom_call.1} parent=1 // pred_check
      _
    $region87: #{tpu_custom_call.1} parent=1 // pred_check_branch
      %976 = sbr.rel (0) target = $region89
    $region88: #{tpu_custom_call.1} parent=1 // pred_region
      _
    $region89: #{tpu_custom_call.1} parent=1 // pred_fallthru
      _
    %977 = vsyncpa [#allocation3], 1
    %978 = vsyncpa [#allocation5], 1
    %979 = vsyncpa [#allocation8], 1
    %980 = vsyncpa [#allocation11], 1

</llo_original>
